<compile_context>
chip_gen: v7x
topology: tpu7x:2x2x1
jax: 0.10.0
libtpu: 0.0.40
codegen_flags: <defaults>
</compile_context>

<pallas_src>
import functools

import jax
import jax.numpy as jnp
from jax.experimental import pallas as pl
from jax.experimental.pallas import tpu as pltpu


def _affine_apply_kernel(packed_ref, out_ref):
    """packed = [accu, A, C, pad] in SMEM;  out[0] = A*accu + C (folded recurrence)."""
    out_ref[0] = packed_ref[1] * packed_ref[0] + packed_ref[2]


@functools.lru_cache(maxsize=None)
def _build_simulator_forward(steps: int):
    """Build (once per `steps`) a jitted forward wrapping a single-FMA Pallas kernel."""
    smem = pl.BlockSpec(memory_space=pltpu.MemorySpace.SMEM)
    kernel_call = pl.pallas_call(
        _affine_apply_kernel,
        out_shape=jax.ShapeDtypeStruct((1,), jnp.float32),
        in_specs=[smem],
        out_specs=smem,
    )

    @jax.jit
    def fwd(accu, w, b):
        accu0 = jnp.asarray(accu, jnp.float32).reshape(())
        w0 = jnp.asarray(w, jnp.float32).reshape(())
        b0 = jnp.asarray(b, jnp.float32).reshape(())

        # One loop iteration (val == accu on entry): val <- a*val + c with a = 2w, c = b.
        a, c = w0 + w0, b0

        # Trace-time exponentiation-by-squaring of f(x) = a*x + c:  f^steps(x) = A*x + C.
        # These few scalar ops are fused by XLA; only the final FMA runs in the kernel.
        A = jnp.float32(1.0)
        C = jnp.float32(0.0)
        n = int(steps)
        while n > 0:
            if n & 1:
                C = a * C + c
                A = a * A
            n >>= 1
            if n:
                c = a * c + c   # square the map: f -> f∘f (c before a)
                a = a * a

        packed = jnp.stack([
            accu0,
            jnp.asarray(A, jnp.float32),
            jnp.asarray(C, jnp.float32),
            jnp.zeros((), jnp.float32),   # pad to 4 elements (single SMEM DMA)
        ])
        return kernel_call(packed)

    return fwd


def simulator_forward(steps: int, accu_init, calc_weight, calc_bias):
    """Matches Simulator.forward(steps): returns [val] of shape (1,) float32."""
    fwd = _build_simulator_forward(int(steps))
    return [fwd(accu_init, calc_weight, calc_bias)]


def _reference(steps: int, accu_init, w, b):
    """Literal re-implementation of the PyTorch/poptorch iterated semantics."""
    val = jnp.float32(accu_init)
    accu = val
    for _ in range(int(steps)):
        val = val + accu                              # val = val + self.state.accu
        val = jnp.float32(w) * val + jnp.float32(b)   # val = self.calc(val)
        accu = val                                    # self.state.accu.copy_(val)
    return val


if __name__ == "__main__":
    key = jax.random.PRNGKey(0)
    kw, kb = jax.random.split(key)

    # Deterministic parameter init for the (unspecified) calculator: nn.Linear(1, 1)-like.
    # TODO(synk): if the real `calculator` module is non-affine, the closed-form fold is
    # invalid and the recurrence must be executed step by step instead.
    calc_weight = jax.random.uniform(kw, (1, 1), jnp.float32, 0.1, 0.6)  # keep growth tame
    calc_bias = jax.random.uniform(kb, (1,), jnp.float32, -0.5, 0.5)

    accu_init = jnp.array([4.0], dtype=jnp.float32)   # State.accu buffer

    for steps in (0, 1, 8, 32):
        (val,) = simulator_forward(steps, accu_init, calc_weight, calc_bias)
        val = jax.block_until_ready(val)
        ref = _reference(steps, 4.0, calc_weight[0, 0], calc_bias[0])
        assert jnp.allclose(val[0], ref, rtol=2e-5, atol=1e-5), (steps, val, ref)

    # Second call at a cached `steps` value: no retrace/recompile (lru_cache + jit).
    (val2,) = simulator_forward(32, accu_init, calc_weight, calc_bias)
    jax.block_until_ready(val2)

    print("KERNEL_OK")
</pallas_src>

<mosaic_0001>
module attributes {stable_mosaic.version = 11 : i64} {
  func.func @_affine_apply_kernel(%arg0: memref<4xf32, #tpu.memory_space<smem>>, %arg1: memref<1xf32, #tpu.memory_space<smem>>) attributes {dimension_semantics = [], scalar_prefetch = 0 : i64, scratch_operands = 0 : i64, tpu.core_type = #tpu.core_type<tc>} {
    %c1 = arith.constant 1 : index
    %0 = memref.load %arg0[%c1] : memref<4xf32, #tpu.memory_space<smem>>
    %c0 = arith.constant 0 : index
    %1 = memref.load %arg0[%c0] : memref<4xf32, #tpu.memory_space<smem>>
    %2 = arith.mulf %0, %1 : f32
    %c2 = arith.constant 2 : index
    %3 = memref.load %arg0[%c2] : memref<4xf32, #tpu.memory_space<smem>>
    %4 = arith.addf %2, %3 : f32
    %c0_0 = arith.constant 0 : index
    %5 = memref.load %arg1[%c0_0] : memref<1xf32, #tpu.memory_space<smem>>
    memref.store %4, %arg1[%c0_0] : memref<1xf32, #tpu.memory_space<smem>>
    return
  }
}

</mosaic_0001>

<llo_original>
// kernel: fwd.1
$region0: #{fwd.1}
  #allocation0 [shape = 'u32[]', space=smem, size = 0x4, offset = 0x4, fixed_abs, tag = 'smem constant byte address 0x4 - core index']
  #allocation1 [shape = 'u32[144,128]{1,0:T(1,128)}', space=vmem, size = 0x12000, scoped, tag = 'internal scratch']
  %s0 = inlined_call_operand.vmem [shape: f32[4], index: 0, kind: input, shape index: {}]
  %s1 = inlined_call_operand.hbm [shape: f32[1], index: 1, kind: output, shape index: {}]
  %s2 = sld [smem:[#allocation0]]
  $region18: #{fwd.1} parent=0
    _
  %s4 = ssub.s32 1, %s2
  %s5 = scalar_select 0, %s4, %s2
  $region1: #{fwd.1} parent=0
    #allocation2 [shape = 'u8[512]{0}', space=smem, size = 0x200, scoped, tag = 'input window, operand 0, single buffered']
    #allocation3 [shape = 's32[1]{0}', space=sflag, size = 0x4, scoped, tag = 'scoped memory for fwd.1']
    #allocation4 [shape = 's32[1]{0}', space=sflag, size = 0x4, scoped, tag = 'scoped memory for fwd.1']
    #allocation5 [shape = 'u8[512]{0}', space=smem, size = 0x200, scoped, tag = 'output window, operand 0, single buffered']
    %6 = vsyncpa [#allocation4], 0
    %7 = vsyncpa [#allocation3], 0
    // Predicated region
    $region2: #{fwd.1} parent=1 // pred_check
      _
    $region3: #{fwd.1} parent=1 // pred_check_branch
      %9 = sbr.rel (0) target = $region5
    $region4: #{fwd.1} parent=1 // pred_region
      %s11 = ssub.s32 16, 16
      %12 = vsyncadd [#allocation4], %s11
      %s14 = sshll.u32 %s0, 4
      %s15 = int_to_ptr.vmem [resolvable:$true] %s14
      %17 = dma.vmem_to_smem %s15, 16, [#allocation2], [#allocation4]
    $region5: #{fwd.1} parent=1 // pred_fallthru
      _
    // Predicated region
    $region6: #{fwd.1} parent=1 // pred_check
      _
    $region7: #{fwd.1} parent=1 // pred_check_branch
      %19 = sbr.rel (0) target = $region9
    $region8: #{fwd.1} parent=1 // pred_region
      %20 = dma.done [#allocation4], 16
    $region9: #{fwd.1} parent=1 // pred_fallthru
      _
    %21 = sfence
    %s22 = sld [smem:[#allocation2 + $0x1]]
    %s23 = sld [smem:[#allocation2]]
    %s24 = smul.f32 %s22, %s23
    %s25 = sld [smem:[#allocation2 + $0x2]]
    %s26 = sadd.f32 %s24, %s25
    %s27 = scalar_lea.smem [#allocation5], 0
    %28 = sst [smem:[%s27]] %s26
    // Predicated region
    $region10: #{fwd.1} parent=1 // pred_check
      _
    $region11: #{fwd.1} parent=1 // pred_check_branch
      %30 = sbr.rel (0) target = $region13
    $region12: #{fwd.1} parent=1 // pred_region
      %s32 = ssub.s32 16, 16
      %33 = vsyncadd [#allocation3], %s32
      %36 = dma.smem_to_hbm [#allocation5], 16, %s1, [#allocation3]
    $region13: #{fwd.1} parent=1 // pred_fallthru
      _
    // Predicated region
    $region14: #{fwd.1} parent=1 // pred_check
      _
    $region15: #{fwd.1} parent=1 // pred_check_branch
      %38 = sbr.rel (0) target = $region17
    $region16: #{fwd.1} parent=1 // pred_region
      %39 = dma.done [#allocation3], 16
    $region17: #{fwd.1} parent=1 // pred_fallthru
      _
    %40 = sfence
    %41 = vsyncpa [#allocation3], 1
    %42 = vsyncpa [#allocation4], 1

</llo_original>
